<compile_context>
chip_gen: v5e
topology: v5e:2x2
jax: 0.10.0
libtpu: 0.0.40
codegen_flags: <defaults>
</compile_context>

<pallas_src>
import functools

import numpy as np
import jax
import jax.numpy as jnp
from jax.experimental import pallas as pl
from jax.experimental.pallas import tpu as pltpu

_LANE = 128
_SUBLANE = 8
_MAX_BATCH_TILE = 256


def _round_up(x: int, m: int) -> int:
    return (x + m - 1) // m * m


# ---------------------------------------------------------------------------
# Pallas kernels
# ---------------------------------------------------------------------------
def _features_kernel(b_ref, feat_ref, wenc_ref, enc_ref, logf_ref):
    """Single MXU matmul against the concatenated [W_fft | sin_basis | pad]
    weight (lane-dense output) + fused elementwise log."""
    enc_ref[...] = jnp.dot(b_ref[...], wenc_ref[...],
                           preferred_element_type=jnp.float32)
    logf_ref[...] = jnp.log(feat_ref[...])


def _mlp_kernel(x_ref, w1_ref, b1_ref, w2_ref, b2_ref, o_ref):
    """Linear -> ReLU -> Linear head (MetaSolverMLP.model)."""
    h = jnp.dot(x_ref[...], w1_ref[...], preferred_element_type=jnp.float32)
    h = jnp.maximum(h + b1_ref[...], 0.0)
    o_ref[...] = (jnp.dot(h, w2_ref[...], preferred_element_type=jnp.float32)
                  + b2_ref[...])


# ---------------------------------------------------------------------------
# Deterministic constants (match the PyTorch __init__), cached device-resident
# ---------------------------------------------------------------------------
def make_sin_basis(n: int) -> np.ndarray:
    # torch: sin(arange(1,N+1).reshape(N,1) * [i/(N+1) for i in 1..N] * pi)
    j = np.arange(1, n + 1, dtype=np.float64).reshape(n, 1)
    i = np.arange(1, n + 1, dtype=np.float64).reshape(1, n) / (n + 1)
    return np.sin(j * i * np.pi).astype(np.float32)            # (N, N)


def make_rfft_matrix(n: int, out_dim: int) -> np.ndarray:
    # rfft bin k of x (length n): sum_t x[t] * exp(-2*pi*i*k*t/n)
    # columns interleaved: [re_0, im_0, re_1, im_1, ...] for k < out_dim//2
    assert out_dim % 2 == 0, "FFTEncoder out_dim must be even"
    n_bins = out_dim // 2
    t = np.arange(n, dtype=np.float64).reshape(n, 1)
    k = np.arange(n_bins, dtype=np.float64).reshape(1, n_bins)
    ang = 2.0 * np.pi * t * k / n
    w = np.zeros((n, out_dim), dtype=np.float64)
    w[:, 0::2] = np.cos(ang)
    w[:, 1::2] = -np.sin(ang)
    return w.astype(np.float32)                                 # (N, out_dim)


@functools.lru_cache(maxsize=None)
def _encoder_weight(n: int, fft_out_dim: int) -> jnp.ndarray:
    """[W_fft | sin_basis | zero-pad], columns padded to a multiple of 128."""
    p = _round_up(fft_out_dim + n, _LANE)
    w = np.zeros((n, p), dtype=np.float32)
    w[:, :fft_out_dim] = make_rfft_matrix(n, fft_out_dim)
    w[:, fft_out_dim:fft_out_dim + n] = make_sin_basis(n)
    return jnp.asarray(w)                                       # device-resident


# ---------------------------------------------------------------------------
# pallas_call wrappers
# ---------------------------------------------------------------------------
def _batch_tile(bsz: int) -> int:
    return min(_round_up(bsz, _SUBLANE), _MAX_BATCH_TILE)


def _features_pallas(b, feat, w_enc):
    bsz, n = b.shape
    f = feat.shape[1]
    p = w_enc.shape[1]
    bt = _batch_tile(bsz)
    b_pad = _round_up(bsz, bt)
    if b_pad != bsz:
        b = jnp.pad(b, ((0, b_pad - bsz), (0, 0)))
        feat = jnp.pad(feat, ((0, b_pad - bsz), (0, 0)), constant_values=1.0)

    cost = pl.CostEstimate(
        flops=2 * b_pad * n * p,
        transcendentals=b_pad * f,
        bytes_accessed=4 * (b_pad * n + b_pad * f + n * p + b_pad * p + b_pad * f),
    )
    enc, logf = pl.pallas_call(
        _features_kernel,
        out_shape=(jax.ShapeDtypeStruct((b_pad, p), jnp.float32),
                   jax.ShapeDtypeStruct((b_pad, f), jnp.float32)),
        grid=(b_pad // bt,),
        in_specs=[pl.BlockSpec((bt, n), lambda i: (i, 0)),
                  pl.BlockSpec((bt, f), lambda i: (i, 0)),
                  pl.BlockSpec((n, p), lambda i: (0, 0))],
        out_specs=(pl.BlockSpec((bt, p), lambda i: (i, 0)),
                   pl.BlockSpec((bt, f), lambda i: (i, 0))),
        compiler_params=pltpu.CompilerParams(dimension_semantics=("parallel",)),
        cost_estimate=cost,
    )(b, feat, w_enc)
    return enc[:bsz], logf[:bsz]


def _mlp_pallas(x, w1, b1, w2, b2):
    bsz, d = x.shape
    h = w1.shape[1]
    o = w2.shape[1]
    bt = _batch_tile(bsz)
    b_pad = _round_up(bsz, bt)
    if b_pad != bsz:
        x = jnp.pad(x, ((0, b_pad - bsz), (0, 0)))

    cost = pl.CostEstimate(
        flops=2 * b_pad * d * h + 2 * b_pad * h * o,
        transcendentals=0,
        bytes_accessed=4 * (b_pad * d + d * h + h + h * o + o + b_pad * o),
    )
    out = pl.pallas_call(
        _mlp_kernel,
        out_shape=jax.ShapeDtypeStruct((b_pad, o), jnp.float32),
        grid=(b_pad // bt,),
        in_specs=[pl.BlockSpec((bt, d), lambda i: (i, 0)),
                  pl.BlockSpec((d, h), lambda i: (0, 0)),
                  pl.BlockSpec((1, h), lambda i: (0, 0)),
                  pl.BlockSpec((h, o), lambda i: (0, 0)),
                  pl.BlockSpec((1, o), lambda i: (0, 0))],
        out_specs=pl.BlockSpec((bt, o), lambda i: (i, 0)),
        compiler_params=pltpu.CompilerParams(dimension_semantics=("parallel",)),
        cost_estimate=cost,
    )(x, w1, b1, w2, b2)
    return out[:bsz]


# ---------------------------------------------------------------------------
# jitted cores
# ---------------------------------------------------------------------------
def _features_core(b, feat, w_enc, fft_out_dim):
    n = b.shape[1]
    enc, logf = _features_pallas(b, feat, w_enc)
    b_freq = enc[:, :fft_out_dim]
    b_sin = enc[:, fft_out_dim:fft_out_dim + n]
    return b[..., None], b_freq, b_sin, logf


@functools.partial(jax.jit, static_argnames=("fft_out_dim",))
def _get_features_jit(b, feat, w_enc, *, fft_out_dim):
    return _features_core(b, feat, w_enc, fft_out_dim)


@functools.partial(jax.jit, static_argnames=("fft_out_dim",))
def _forward_jit(b, feat, w_enc, w1, b1, w2, b2, *, fft_out_dim):
    bs = b.shape[0]
    b_u, b_freq, b_sin, logf = _features_core(b, feat, w_enc, fft_out_dim)
    # torch.cat([features[k].reshape(bs, -1) for k in self.features], -1)
    x = jnp.concatenate(
        [b_u.reshape(bs, -1), b_freq, b_sin, logf], axis=-1)
    return _mlp_pallas(x, w1, b1, w2, b2)


# ---------------------------------------------------------------------------
# Public API
# ---------------------------------------------------------------------------
def meta_solver_get_features(tau, *, fft_out_dim: int, sin_out_dim: int):
    """MetaSolver._get_features for features = {'b','b_freq','b_sin','features'}."""
    b = tau['b'].astype(jnp.float32)                            # (B, N)
    assert sin_out_dim == b.shape[-1], "SinEncoder requires signal length == out_dim"
    feat = tau['features'].astype(jnp.float32)
    w_enc = _encoder_weight(b.shape[-1], fft_out_dim)
    b_u, b_freq, b_sin, logf = _get_features_jit(
        b, feat, w_enc, fft_out_dim=fft_out_dim)
    return {'b': b_u, 'b_freq': b_freq, 'b_sin': b_sin, 'features': logf}


def meta_solver_mlp_forward(tau, params, *, fft_out_dim: int, sin_out_dim: int):
    """MetaSolverMLP.forward: features -> concat -> MLP -> theta."""
    b = tau['b'].astype(jnp.float32)
    assert sin_out_dim == b.shape[-1]
    feat = tau['features'].astype(jnp.float32)
    w_enc = _encoder_weight(b.shape[-1], fft_out_dim)
    return _forward_jit(b, feat, w_enc,
                        params['w1'], params['b1'], params['w2'], params['b2'],
                        fft_out_dim=fft_out_dim)


# ---------------------------------------------------------------------------
if __name__ == "__main__":
    key = jax.random.PRNGKey(0)
    k1, k2, k3, k4, k5, k6 = jax.random.split(key, 6)

    B = 8            # batch
    N = 128          # signal length == SinEncoder out_dim
    FFT_DIM = 32     # FFTEncoder out_dim
    FEAT_DIM = 32    # tau['features'] width
    HIDDEN = 64      # MLP hidden
    OUT_DIM = 16     # MLP output (sum of params_learn dims)

    b_signal = jax.random.normal(k1, (B, N), dtype=jnp.float32)
    extra = jax.random.uniform(k2, (B, FEAT_DIM), dtype=jnp.float32,
                               minval=0.5, maxval=2.0)
    tau = {'b': b_signal, 'features': extra}

    in_dim = N + FFT_DIM + N + FEAT_DIM                         # concat order: b,b_freq,b_sin,features
    params = {
        'w1': 0.05 * jax.random.normal(k3, (in_dim, HIDDEN), dtype=jnp.float32),
        'b1': 0.05 * jax.random.normal(k4, (1, HIDDEN), dtype=jnp.float32),
        'w2': 0.05 * jax.random.normal(k5, (HIDDEN, OUT_DIM), dtype=jnp.float32),
        'b2': 0.05 * jax.random.normal(k6, (1, OUT_DIM), dtype=jnp.float32),
    }

    feats = meta_solver_get_features(tau, fft_out_dim=FFT_DIM, sin_out_dim=N)
    theta = meta_solver_mlp_forward(tau, params, fft_out_dim=FFT_DIM, sin_out_dim=N)
    jax.block_until_ready((feats, theta))

    # ---- numerical checks against plain-JAX/numpy references ----
    ref_freq_c = jnp.fft.rfft(b_signal, axis=-1)[..., :FFT_DIM // 2]
    ref_freq = jnp.stack([ref_freq_c.real, ref_freq_c.imag], axis=-1).reshape(B, FFT_DIM)
    ref_sin = np.asarray(b_signal) @ make_sin_basis(N)
    ref_log = jnp.log(extra)
    x_ref = jnp.concatenate([b_signal, ref_freq, jnp.asarray(ref_sin), ref_log], axis=-1)
    ref_theta = (jnp.maximum(x_ref @ params['w1'] + params['b1'], 0.0)
                 @ params['w2'] + params['b2'])

    assert feats['b'].shape == (B, N, 1)
    assert np.allclose(np.asarray(feats['b_freq']), np.asarray(ref_freq),
                       atol=2e-3, rtol=2e-3)
    assert np.allclose(np.asarray(feats['b_sin']), np.asarray(ref_sin),
                       atol=2e-3, rtol=2e-3)
    assert np.allclose(np.asarray(feats['features']), np.asarray(ref_log), atol=1e-5)
    assert np.allclose(np.asarray(theta), np.asarray(ref_theta),
                       atol=5e-3, rtol=5e-3)

    print("KERNEL_OK")
</pallas_src>

<mosaic_0001>
module attributes {stable_mosaic.version = 11 : i64} {
  func.func @_features_kernel(%arg0: i32, %arg1: memref<8x128xf32, #tpu.memory_space<vmem>>, %arg2: memref<8x32xf32, #tpu.memory_space<vmem>>, %arg3: memref<128x256xf32, #tpu.memory_space<vmem>>, %arg4: memref<8x256xf32, #tpu.memory_space<vmem>>, %arg5: memref<8x32xf32, #tpu.memory_space<vmem>>) attributes {dimension_semantics = [#tpu.dimension_semantics<parallel>], iteration_bounds = array<i64: 1>, scalar_prefetch = 0 : i64, scratch_operands = 0 : i64, tpu.core_type = #tpu.core_type<tc>, window_params = [{transform_indices = @transform_0, window_bounds = array<i64: 8, 128>}, {transform_indices = @transform_1, window_bounds = array<i64: 8, 32>}, {pipeline_mode = #tpu.pipeline_mode<synchronous>, transform_indices = @transform_2, window_bounds = array<i64: 128, 256>}, {transform_indices = @transform_3, window_bounds = array<i64: 8, 256>}, {transform_indices = @transform_4, window_bounds = array<i64: 8, 32>}]} {
    %c0 = arith.constant 0 : index
    %c0_0 = arith.constant 0 : index
    %0 = vector.load %arg1[%c0, %c0_0] : memref<8x128xf32, #tpu.memory_space<vmem>>, vector<8x128xf32>
    %c0_1 = arith.constant 0 : index
    %c0_2 = arith.constant 0 : index
    %1 = vector.load %arg3[%c0_1, %c0_2] : memref<128x256xf32, #tpu.memory_space<vmem>>, vector<128x256xf32>
    %cst = arith.constant dense<0.000000e+00> : vector<8x256xf32>
    %2 = tpu.matmul %0, %1, %cst {dimension_numbers = #tpu.dot_dimension_numbers<[1], [0], [0], [1], [0, 0, 1, 1], [], []>} : vector<8x128xf32>, vector<128x256xf32>, vector<8x256xf32> -> vector<8x256xf32>
    %c0_3 = arith.constant 0 : index
    %c0_4 = arith.constant 0 : index
    %3 = vector.load %arg4[%c0_3, %c0_4] : memref<8x256xf32, #tpu.memory_space<vmem>>, vector<8x256xf32>
    tpu.vector_store %arg4[%c0_3, %c0_4], %2 {strides = array<i32>} : memref<8x256xf32, #tpu.memory_space<vmem>>, vector<8x256xf32>,
    %c0_5 = arith.constant 0 : index
    %c0_6 = arith.constant 0 : index
    %4 = vector.load %arg2[%c0_5, %c0_6] : memref<8x32xf32, #tpu.memory_space<vmem>>, vector<8x32xf32>
    %5 = math.log %4 : vector<8x32xf32>
    %c0_7 = arith.constant 0 : index
    %c0_8 = arith.constant 0 : index
    %6 = vector.load %arg5[%c0_7, %c0_8] : memref<8x32xf32, #tpu.memory_space<vmem>>, vector<8x32xf32>
    tpu.vector_store %arg5[%c0_7, %c0_8], %5 {strides = array<i32>} : memref<8x32xf32, #tpu.memory_space<vmem>>, vector<8x32xf32>,
    return
  }
  func.func @transform_0(%arg0: i32) -> (i32, i32) {
    %c0_i32 = arith.constant 0 : i32
    %c0_i32_0 = arith.constant 0 : i32
    return %arg0, %c0_i32 : i32, i32
  }
  func.func @transform_1(%arg0: i32) -> (i32, i32) {
    %c0_i32 = arith.constant 0 : i32
    %c0_i32_0 = arith.constant 0 : i32
    return %arg0, %c0_i32 : i32, i32
  }
  func.func @transform_2(%arg0: i32) -> (i32, i32) {
    %c0_i32 = arith.constant 0 : i32
    %c0_i32_0 = arith.constant 0 : i32
    %c0_i32_1 = arith.constant 0 : i32
    return %c0_i32, %c0_i32_0 : i32, i32
  }
  func.func @transform_3(%arg0: i32) -> (i32, i32) {
    %c0_i32 = arith.constant 0 : i32
    %c0_i32_0 = arith.constant 0 : i32
    return %arg0, %c0_i32 : i32, i32
  }
  func.func @transform_4(%arg0: i32) -> (i32, i32) {
    %c0_i32 = arith.constant 0 : i32
    %c0_i32_0 = arith.constant 0 : i32
    return %arg0, %c0_i32 : i32, i32
  }
}

</mosaic_0001>

<llo_original>
// kernel: _get_features_jit.1
$region0: #{_get_features_jit.1}
  #allocation0 [shape = 'u32[]', space=smem, size = 0x4, offset = 0x4, fixed_abs, tag = 'smem constant byte address 0x4 - core index']
  #allocation1 [shape = 'u32[72,128]{1,0:T(1,128)}', space=vmem, size = 0x9000, scoped, tag = 'internal scratch']
  %s0 = inlined_call_operand.hbm [shape: f32[8,128], index: 0, kind: input, shape index: {}]
  %s1 = inlined_call_operand.hbm [shape: f32[8,32], index: 1, kind: input, shape index: {}]
  %s2 = inlined_call_operand.hbm [shape: f32[128,256], index: 2, kind: input, shape index: {}]
  %s3 = inlined_call_operand.vmem [shape: f32[8,256], index: 3, kind: output, shape index: {0}]
  %s4 = inlined_call_operand.hbm [shape: f32[8,32], index: 4, kind: output, shape index: {1}]
  %5 = xla_tuple %s3, %s4
  %s6 = sld [smem:[#allocation0]]
  $region42: #{_get_features_jit.1} parent=0
    _
  %s8 = ssub.s32 1, %s6
  %s9 = scalar_select 0, %s8, %s6
  $region1: #{_get_features_jit.1} parent=0
    #allocation2 [shape = 'u8[4096]{0}', space=vmem, size = 0x1000, scoped, tag = 'input window, operand 0, single buffered']
    #allocation3 [shape = 's32[1]{0}', space=sflag, size = 0x4, scoped, tag = 'scoped memory for _get_features_jit.1']
    #allocation4 [shape = 's32[1]{0}', space=sflag, size = 0x4, scoped, tag = 'scoped memory for _get_features_jit.1']
    #allocation5 [shape = 'u8[4096]{0}', space=vmem, size = 0x1000, scoped, tag = 'input window, operand 1, single buffered']
    #allocation6 [shape = 's32[1]{0}', space=sflag, size = 0x4, scoped, tag = 'scoped memory for _get_features_jit.1']
    #allocation7 [shape = 'u8[131072]{0}', space=vmem, size = 0x20000, scoped, tag = 'input window, operand 2, single buffered']
    #allocation8 [shape = 'u8[4096]{0}', space=vmem, size = 0x1000, scoped, tag = 'output window, operand 1, single buffered']
    %10 = vsyncpa [#allocation3], 0
    %11 = vsyncpa [#allocation6], 0
    %12 = vsyncpa [#allocation4], 0
    // Predicated region
    $region2: #{_get_features_jit.1} parent=1 // pred_check
      _
    $region3: #{_get_features_jit.1} parent=1 // pred_check_branch
      %14 = sbr.rel (0) target = $region5
    $region4: #{_get_features_jit.1} parent=1 // pred_region
      %16 = vsyncadd [#allocation3], 0
      %s18 = sshll.u32 %s0, 4
      %s19 = int_to_ptr.hbm [resolvable:$true] %s18
      %s20 = sshll.u32 [#allocation2], 4
      %s21 = int_to_ptr.vmem [resolvable:$true] %s20
      %23 = dma.hbm_to_vmem [thread:$0]  %s19, 128, %s21, [#allocation3]
    $region5: #{_get_features_jit.1} parent=1 // pred_fallthru
      _
    // Predicated region
    $region6: #{_get_features_jit.1} parent=1 // pred_check
      _
    $region7: #{_get_features_jit.1} parent=1 // pred_check_branch
      %25 = sbr.rel (0) target = $region9
    $region8: #{_get_features_jit.1} parent=1 // pred_region
      %27 = vsyncadd [#allocation6], 0
      %s29 = sshll.u32 %s1, 4
      %s30 = int_to_ptr.hbm [resolvable:$true] %s29
      %s31 = sshll.u32 [#allocation5], 4
      %s32 = int_to_ptr.vmem [resolvable:$true] %s31
      %34 = dma.hbm_to_vmem [thread:$0]  %s30, 128, %s32, [#allocation6]
    $region9: #{_get_features_jit.1} parent=1 // pred_fallthru
      _
    // Predicated region
    $region10: #{_get_features_jit.1} parent=1 // pred_check
      _
    $region11: #{_get_features_jit.1} parent=1 // pred_check_branch
      %36 = sbr.rel (0) target = $region13
    $region12: #{_get_features_jit.1} parent=1 // pred_region
      %38 = vsyncadd [#allocation6], 0
      %s39 = sshll.u32 %s2, 4
      %s40 = int_to_ptr.hbm [resolvable:$true] %s39
      %s41 = sshll.u32 [#allocation7], 4
      %s42 = int_to_ptr.vmem [resolvable:$true] %s41
      %47 = dma.hbm_to_vmem [thread:$0]  %s40, 4096, %s42, [#allocation6], 256, 256, 16
    $region13: #{_get_features_jit.1} parent=1 // pred_fallthru
      _
    // Predicated region
    $region14: #{_get_features_jit.1} parent=1 // pred_check
      _
    $region15: #{_get_features_jit.1} parent=1 // pred_check_branch
      %49 = sbr.rel (0) target = $region17
    $region16: #{_get_features_jit.1} parent=1 // pred_region
      %51 = dma.done [#allocation3], 128
    $region17: #{_get_features_jit.1} parent=1 // pred_fallthru
      _
    // Predicated region
    $region18: #{_get_features_jit.1} parent=1 // pred_check
      _
    $region19: #{_get_features_jit.1} parent=1 // pred_check_branch
      %53 = sbr.rel (0) target = $region21
    $region20: #{_get_features_jit.1} parent=1 // pred_region
      %55 = dma.done [#allocation6], 128
    $region21: #{_get_features_jit.1} parent=1 // pred_fallthru
      _
    // Predicated region
    $region22: #{_get_features_jit.1} parent=1 // pred_check
      _
    $region23: #{_get_features_jit.1} parent=1 // pred_check_branch
      %57 = sbr.rel (0) target = $region25
    $region24: #{_get_features_jit.1} parent=1 // pred_region
      %59 = dma.done [#allocation6], 4096
    $region25: #{_get_features_jit.1} parent=1 // pred_fallthru
      _
    %v60 = vld [vmem:[#allocation2] sm:$0xff]
    %v61 = vld [vmem:[#allocation7] sm:$0xff]
    %v62 = vld [vmem:[#allocation7 + $0x8] sm:$0xff]
    %v63 = vld [vmem:[#allocation7 + $0x10] sm:$0xff]
    %v64 = vld [vmem:[#allocation7 + $0x18] sm:$0xff]
    %v65 = vld [vmem:[#allocation7 + $0x20] sm:$0xff]
    %v66 = vld [vmem:[#allocation7 + $0x28] sm:$0xff]
    %v67 = vld [vmem:[#allocation7 + $0x30] sm:$0xff]
    %v68 = vld [vmem:[#allocation7 + $0x38] sm:$0xff]
    %v69 = vld [vmem:[#allocation7 + $0x40] sm:$0xff]
    %v70 = vld [vmem:[#allocation7 + $0x48] sm:$0xff]
    %v71 = vld [vmem:[#allocation7 + $0x50] sm:$0xff]
    %v72 = vld [vmem:[#allocation7 + $0x58] sm:$0xff]
    %v73 = vld [vmem:[#allocation7 + $0x60] sm:$0xff]
    %v74 = vld [vmem:[#allocation7 + $0x68] sm:$0xff]
    %v75 = vld [vmem:[#allocation7 + $0x70] sm:$0xff]
    %v76 = vld [vmem:[#allocation7 + $0x78] sm:$0xff]
    %v77 = vld [vmem:[#allocation7 + $0x80] sm:$0xff]
    %v78 = vld [vmem:[#allocation7 + $0x88] sm:$0xff]
    %v79 = vld [vmem:[#allocation7 + $0x90] sm:$0xff]
    %v80 = vld [vmem:[#allocation7 + $0x98] sm:$0xff]
    %v81 = vld [vmem:[#allocation7 + $0xa0] sm:$0xff]
    %v82 = vld [vmem:[#allocation7 + $0xa8] sm:$0xff]
    %v83 = vld [vmem:[#allocation7 + $0xb0] sm:$0xff]
    %v84 = vld [vmem:[#allocation7 + $0xb8] sm:$0xff]
    %v85 = vld [vmem:[#allocation7 + $0xc0] sm:$0xff]
    %v86 = vld [vmem:[#allocation7 + $0xc8] sm:$0xff]
    %v87 = vld [vmem:[#allocation7 + $0xd0] sm:$0xff]
    %v88 = vld [vmem:[#allocation7 + $0xd8] sm:$0xff]
    %v89 = vld [vmem:[#allocation7 + $0xe0] sm:$0xff]
    %v90 = vld [vmem:[#allocation7 + $0xe8] sm:$0xff]
    %v91 = vld [vmem:[#allocation7 + $0xf0] sm:$0xff]
    %v92 = vld [vmem:[#allocation7 + $0xf8] sm:$0xff]
    %93 = vmatpush.msra.mxu0 %v91
    %94 = vmatpush.msra.mxu0 %v89
    %95 = vmatpush.msra.mxu0 %v87
    %96 = vmatpush.msra.mxu0 %v85
    %97 = vmatpush.msra.mxu0 %v83
    %98 = vmatpush.msra.mxu0 %v81
    %99 = vmatpush.msra.mxu0 %v79
    %100 = vmatpush.msra.mxu0 %v77
    %101 = vmatpush.msra.mxu0 %v75
    %102 = vmatpush.msra.mxu0 %v73
    %103 = vmatpush.msra.mxu0 %v71
    %104 = vmatpush.msra.mxu0 %v69
    %105 = vmatpush.msra.mxu0 %v67
    %106 = vmatpush.msra.mxu0 %v65
    %107 = vmatpush.msra.mxu0 %v63
    %108 = vmatpush.msra.mxu0 %v61
    %109 = vmatmul.f32.gmra.mxu0 %v60
    %v110 = vpop.f32.mrf.mxu0
    %v111 = vadd.f32 0.0, %v110
    %112 = vdwg.mxu0
    %113 = vmatpush.msra.mxu0 %v92
    %114 = vmatpush.msra.mxu0 %v90
    %115 = vmatpush.msra.mxu0 %v88
    %116 = vmatpush.msra.mxu0 %v86
    %117 = vmatpush.msra.mxu0 %v84
    %118 = vmatpush.msra.mxu0 %v82
    %119 = vmatpush.msra.mxu0 %v80
    %120 = vmatpush.msra.mxu0 %v78
    %121 = vmatpush.msra.mxu0 %v76
    %122 = vmatpush.msra.mxu0 %v74
    %123 = vmatpush.msra.mxu0 %v72
    %124 = vmatpush.msra.mxu0 %v70
    %125 = vmatpush.msra.mxu0 %v68
    %126 = vmatpush.msra.mxu0 %v66
    %127 = vmatpush.msra.mxu0 %v64
    %128 = vmatpush.msra.mxu0 %v62
    %129 = vmatmul.f32.gmra.mxu0 %v60
    %v130 = vpop.f32.mrf.mxu0
    %v131 = vadd.f32 0.0, %v130
    %132 = vdwg.mxu0
    %133 = vst [vmem:[%s3] sm:$0xff] %v111
    %134 = vst [vmem:[%s3 + $0x8] sm:$0xff] %v131
    %v135 = vld [vmem:[#allocation5] sm:$0xff]
    %v136 = vlog2.pop %v135
    %v137 = vmul.f32 %v136, 0.6931472
    %vm138 = vcmask 261120
    %139 = vst.msk [vmem:[#allocation8] sm:$0xff] %vm138, %v137
    // Predicated region
    $region26: #{_get_features_jit.1} parent=1 // pred_check
      _
    $region27: #{_get_features_jit.1} parent=1 // pred_check_branch
      %141 = sbr.rel (0) target = $region29
    $region28: #{_get_features_jit.1} parent=1 // pred_region
      _
    $region29: #{_get_features_jit.1} parent=1 // pred_fallthru
      _
    // Predicated region
    $region30: #{_get_features_jit.1} parent=1 // pred_check
      _
    $region31: #{_get_features_jit.1} parent=1 // pred_check_branch
      %143 = sbr.rel (0) target = $region33
    $region32: #{_get_features_jit.1} parent=1 // pred_region
      %145 = vsyncadd [#allocation4], 0
      %s147 = sshll.u32 [#allocation8], 4
      %s148 = int_to_ptr.vmem [resolvable:$true] %s147
      %s149 = sshll.u32 %s4, 4
      %s150 = int_to_ptr.hbm [resolvable:$true] %s149
      %152 = dma.vmem_to_hbm [thread:$0]  %s148, 128, %s150, [#allocation4]
    $region33: #{_get_features_jit.1} parent=1 // pred_fallthru
      _
    // Predicated region
    $region34: #{_get_features_jit.1} parent=1 // pred_check
      _
    $region35: #{_get_features_jit.1} parent=1 // pred_check_branch
      %154 = sbr.rel (0) target = $region37
    $region36: #{_get_features_jit.1} parent=1 // pred_region
      _
    $region37: #{_get_features_jit.1} parent=1 // pred_fallthru
      _
    // Predicated region
    $region38: #{_get_features_jit.1} parent=1 // pred_check
      _
    $region39: #{_get_features_jit.1} parent=1 // pred_check_branch
      %156 = sbr.rel (0) target = $region41
    $region40: #{_get_features_jit.1} parent=1 // pred_region
      %158 = dma.done [#allocation4], 128
    $region41: #{_get_features_jit.1} parent=1 // pred_fallthru
      _
    %159 = vsyncpa [#allocation3], 1
    %160 = vsyncpa [#allocation6], 1
    %161 = vsyncpa [#allocation4], 1

</llo_original>
